<compile_context>
chip_gen: v7x
topology: tpu7x:2x2x1
jax: 0.10.0
libtpu: 0.0.40
codegen_flags: <defaults>
</compile_context>

<pallas_src>
import jax
import jax.numpy as jnp
from jax.experimental import pallas as pl
from jax.experimental.pallas import tpu as pltpu

DIM = 2
W = 64
OUT_DIM = 2

# SELU constants (same as torch.nn.SELU)
_SELU_ALPHA = 1.6732632423543772848170429916717
_SELU_SCALE = 1.0507009873554804934193349852946

# Batch-tile sizing (lanes):
#   * default 8192 lanes/step amortizes the per-grid-step pipeline overhead
#     and gives large lane-dense DMAs (>=85% of HBM roofline per tile sweep).
#   * hard cap 16384 keeps per-step VMEM (~3 live [64,TB] f32 intermediates
#     + double-buffered [8,TB] x/out tiles + ~200 KiB resident weights,
#     ~15 MiB at TB=16K) well under v7x's 64 MiB physical VMEM.
_DEFAULT_TB = 8192
_MAX_TB = 16384
_VMEM_LIMIT_BYTES = 48 * 1024 * 1024  # > v5e's 16 MiB default, < v7x's 64 MiB physical


def _selu(x):
    # exp lowers to the EUP (its own VLIW slot) and overlaps with VPU/MXU work.
    # NOTE: jnp.where evaluates both branches; exp on large positive x gives a
    # discarded +inf (benign, no NaN).
    return _SELU_SCALE * jnp.where(x > 0, x, _SELU_ALPHA * (jnp.exp(x) - 1.0))


def mlp_kernel(x_ref,
               w1_ref, b1_ref,
               w2_ref, b2_ref,
               w3_ref, b3_ref,
               w4_ref, b4_ref,
               o_ref):
    # Transposed, batch-on-lanes layout:
    #   x_ref : [DIM, TB]       (DIM = 2 rows, batch lane-dense)
    #   wN    : [out_f, in_f]   (torch nn.Linear layout)
    #   bN    : [out_f, 1]
    #   o_ref : [OUT_DIM, TB]
    x = x_ref[...]

    # Layer 1: [64, 2] @ [2, TB] on the MXU (the MXU has plenty of slack at
    # large TB; keeping this off the VALU removes ~4 of ~21 VPU ops/element).
    h = jnp.dot(w1_ref[...], x, preferred_element_type=jnp.float32) + b1_ref[...]
    h = _selu(h)

    # Hidden layers: [64, 64] @ [64, TB] on the MXU with f32 accumulation.
    h = jnp.dot(w2_ref[...], h, preferred_element_type=jnp.float32) + b2_ref[...]
    h = _selu(h)

    h = jnp.dot(w3_ref[...], h, preferred_element_type=jnp.float32) + b3_ref[...]
    h = _selu(h)

    # Output layer: [2, 64] @ [64, TB]; output stays lane-dense for the store.
    out = jnp.dot(w4_ref[...], h, preferred_element_type=jnp.float32) + b4_ref[...]
    o_ref[...] = out.astype(o_ref.dtype)


def _choose_tb(batch, tb=None):
    """Pick the batch tile size (in lanes).

    * multiples of 128 lanes always; multiples of 256 lanes once non-tiny
      (matches the 2x256 MXUs on v6e/v7x).
    * splits any batch > 256 into at least 2 tiles so the "parallel" grid axis
      can feed both v7x TensorCores (neutral on single-TC v5e/v6e).
    * caps the tile at _MAX_TB to respect v7x's 64 MiB physical VMEM.
    """
    b128 = pl.cdiv(batch, 128) * 128
    if b128 <= 256:
        return b128
    tb_max = _DEFAULT_TB if tb is None else int(tb)
    tb_max = max(256, min(tb_max, _MAX_TB))
    half = pl.cdiv(b128 // 128, 2) * 128      # at least two tiles
    t = min(tb_max, half)
    return pl.cdiv(t, 256) * 256               # multiple of 256 lanes


def mlp_forward_featmajor(xt, params, tb=None):
    """Feature-major forward pass (no wrapper transposes).

    xt: [DIM, B] float32 with the batch on the lane axis.
    Returns [OUT_DIM, B] float32.  Large-batch callers should use this API
    end-to-end; each wrapper transpose is an extra HBM read+write pass over
    the batch array (the kernel itself only touches 16 B/element).
    """
    d, B = xt.shape
    assert d == DIM, f"expected leading dim {DIM}, got {d}"

    tb = _choose_tb(B, tb)
    b_pad = pl.cdiv(B, tb) * tb
    if b_pad != B:
        xt = jnp.pad(xt, ((0, 0), (0, b_pad - B)))

    grid = (b_pad // tb,)

    args = (
        xt,
        params["w1"], params["b1"],
        params["w2"], params["b2"],
        params["w3"], params["b3"],
        params["w4"], params["b4"],
    )

    # x / out: lane-tiled over the batch.  Weights & biases: constant block
    # index -> DMA'd once and resident in VMEM across all grid steps.
    in_specs = [pl.BlockSpec((DIM, tb), lambda i: (0, i))]
    in_specs += [pl.BlockSpec(a.shape, lambda i: (0, 0)) for a in args[1:]]
    out_spec = pl.BlockSpec((OUT_DIM, tb), lambda i: (0, i))

    flops = 2 * b_pad * (DIM * W + W * W + W * W + W * OUT_DIM)
    transcendentals = 3 * b_pad * W
    bytes_accessed = 4 * (DIM * b_pad + OUT_DIM * b_pad
                          + sum(int(a.size) for a in args[1:]))

    out_t = pl.pallas_call(
        mlp_kernel,
        out_shape=jax.ShapeDtypeStruct((OUT_DIM, b_pad), jnp.float32),
        grid=grid,
        in_specs=in_specs,
        out_specs=out_spec,
        compiler_params=pltpu.CompilerParams(
            dimension_semantics=("parallel",),
            vmem_limit_bytes=_VMEM_LIMIT_BYTES),
        cost_estimate=pl.CostEstimate(
            flops=flops,
            transcendentals=transcendentals,
            bytes_accessed=bytes_accessed),
    )(*args)

    if b_pad != B:
        out_t = out_t[:, :B]
    return out_t


def mlp_forward(x, params, tb=None):
    """Convenience wrapper matching the torch layout: x [B, DIM] -> [B, OUT_DIM].

    For large batches prefer mlp_forward_featmajor to keep the [feat, B]
    layout end-to-end and skip the two extra HBM transpose passes.
    """
    return mlp_forward_featmajor(x.T, params, tb=tb).T


def init_params(key):
    """Deterministic init mimicking torch.nn.Linear default
    (uniform(-1/sqrt(fan_in), 1/sqrt(fan_in))), stored in torch layout."""
    def linear_init(key, fan_in, fan_out):
        kw, kb = jax.random.split(key)
        bound = 1.0 / jnp.sqrt(jnp.float32(fan_in))
        w = jax.random.uniform(kw, (fan_out, fan_in), jnp.float32, -bound, bound)
        b = jax.random.uniform(kb, (fan_out, 1), jnp.float32, -bound, bound)
        return w, b

    k1, k2, k3, k4 = jax.random.split(key, 4)
    w1, b1 = linear_init(k1, DIM, W)
    w2, b2 = linear_init(k2, W, W)
    w3, b3 = linear_init(k3, W, W)
    w4, b4 = linear_init(k4, W, OUT_DIM)
    return dict(w1=w1, b1=b1, w2=w2, b2=b2, w3=w3, b3=b3, w4=w4, b4=b4)


def _reference(x, p):
    # Plain-JAX reference matching torch semantics: y = x @ W.T + b.
    h = _selu(x @ p["w1"].T + p["b1"].T)
    h = _selu(h @ p["w2"].T + p["b2"].T)
    h = _selu(h @ p["w3"].T + p["b3"].T)
    return h @ p["w4"].T + p["b4"].T


if __name__ == "__main__":
    key = jax.random.PRNGKey(0)
    kx, kx2, kp = jax.random.split(key, 3)
    params = init_params(kp)

    # Small batch (single tile), torch-style [B, DIM] convenience API.
    B = 8
    x = jax.random.normal(kx, (B, DIM), dtype=jnp.float32)
    out = jax.block_until_ready(mlp_forward(x, params))
    ref = _reference(x, params)
    assert out.shape == (B, OUT_DIM)
    assert jnp.allclose(out, ref, atol=1e-4, rtol=1e-4)

    # Multi-tile path (2 grid steps): exercises batch padding, the parallel
    # grid axis, and the transpose-free feature-major API.
    B2 = 300
    x2 = jax.random.normal(kx2, (B2, DIM), dtype=jnp.float32)
    out2 = jax.block_until_ready(mlp_forward_featmajor(x2.T, params))
    ref2 = _reference(x2, params)
    assert out2.shape == (OUT_DIM, B2)
    assert jnp.allclose(out2.T, ref2, atol=1e-4, rtol=1e-4)

    print("KERNEL_OK")
</pallas_src>

<mosaic_0001>
module attributes {stable_mosaic.version = 11 : i64} {
  func.func @mlp_kernel(%arg0: i32, %arg1: memref<2x128xf32, #tpu.memory_space<vmem>>, %arg2: memref<64x2xf32, #tpu.memory_space<vmem>>, %arg3: memref<64x1xf32, #tpu.memory_space<vmem>>, %arg4: memref<64x64xf32, #tpu.memory_space<vmem>>, %arg5: memref<64x1xf32, #tpu.memory_space<vmem>>, %arg6: memref<64x64xf32, #tpu.memory_space<vmem>>, %arg7: memref<64x1xf32, #tpu.memory_space<vmem>>, %arg8: memref<2x64xf32, #tpu.memory_space<vmem>>, %arg9: memref<2x1xf32, #tpu.memory_space<vmem>>, %arg10: memref<2x128xf32, #tpu.memory_space<vmem>>) attributes {dimension_semantics = [#tpu.dimension_semantics<parallel>], iteration_bounds = array<i64: 1>, scalar_prefetch = 0 : i64, scratch_operands = 0 : i64, tpu.core_type = #tpu.core_type<tc>, window_params = [{transform_indices = @transform_0, window_bounds = array<i64: 2, 128>}, {pipeline_mode = #tpu.pipeline_mode<synchronous>, transform_indices = @transform_1, window_bounds = array<i64: 64, 2>}, {pipeline_mode = #tpu.pipeline_mode<synchronous>, transform_indices = @transform_2, window_bounds = array<i64: 64, 1>}, {pipeline_mode = #tpu.pipeline_mode<synchronous>, transform_indices = @transform_3, window_bounds = array<i64: 64, 64>}, {pipeline_mode = #tpu.pipeline_mode<synchronous>, transform_indices = @transform_4, window_bounds = array<i64: 64, 1>}, {pipeline_mode = #tpu.pipeline_mode<synchronous>, transform_indices = @transform_5, window_bounds = array<i64: 64, 64>}, {pipeline_mode = #tpu.pipeline_mode<synchronous>, transform_indices = @transform_6, window_bounds = array<i64: 64, 1>}, {pipeline_mode = #tpu.pipeline_mode<synchronous>, transform_indices = @transform_7, window_bounds = array<i64: 2, 64>}, {pipeline_mode = #tpu.pipeline_mode<synchronous>, transform_indices = @transform_8, window_bounds = array<i64: 2, 1>}, {transform_indices = @transform_9, window_bounds = array<i64: 2, 128>}]} {
    %c0 = arith.constant 0 : index
    %c0_0 = arith.constant 0 : index
    %0 = vector.load %arg1[%c0, %c0_0] : memref<2x128xf32, #tpu.memory_space<vmem>>, vector<2x128xf32>
    %c0_1 = arith.constant 0 : index
    %c0_2 = arith.constant 0 : index
    %1 = vector.load %arg2[%c0_1, %c0_2] : memref<64x2xf32, #tpu.memory_space<vmem>>, vector<64x2xf32>
    %cst = arith.constant dense<0.000000e+00> : vector<64x128xf32>
    %2 = tpu.matmul %1, %0, %cst {dimension_numbers = #tpu.dot_dimension_numbers<[1], [0], [0], [1], [0, 0, 1, 1], [], []>} : vector<64x2xf32>, vector<2x128xf32>, vector<64x128xf32> -> vector<64x128xf32>
    %c0_3 = arith.constant 0 : index
    %c0_4 = arith.constant 0 : index
    %3 = vector.load %arg3[%c0_3, %c0_4] : memref<64x1xf32, #tpu.memory_space<vmem>>, vector<64x1xf32>
    %4 = vector.broadcast %3 : vector<64x1xf32> to vector<64x128xf32>
    %5 = arith.addf %2, %4 : vector<64x128xf32>
    %cst_5 = arith.constant 0.000000e+00 : f32
    %6 = vector.broadcast %cst_5 : f32 to vector<64x128xf32>
    %7 = arith.cmpf ogt, %5, %6 : vector<64x128xf32>
    %8 = math.exp %5 : vector<64x128xf32>
    %cst_6 = arith.constant 1.000000e+00 : f32
    %9 = vector.broadcast %cst_6 : f32 to vector<64x128xf32>
    %10 = arith.subf %8, %9 : vector<64x128xf32>
    %cst_7 = arith.constant 1.67326319 : f32
    %11 = vector.broadcast %cst_7 : f32 to vector<64x128xf32>
    %12 = arith.mulf %11, %10 : vector<64x128xf32>
    %13 = arith.select %7, %5, %12 : vector<64x128xi1>, vector<64x128xf32>
    %cst_8 = arith.constant 1.05070102 : f32
    %14 = vector.broadcast %cst_8 : f32 to vector<64x128xf32>
    %15 = arith.mulf %14, %13 : vector<64x128xf32>
    %c0_9 = arith.constant 0 : index
    %c0_10 = arith.constant 0 : index
    %16 = vector.load %arg4[%c0_9, %c0_10] : memref<64x64xf32, #tpu.memory_space<vmem>>, vector<64x64xf32>
    %cst_11 = arith.constant dense<0.000000e+00> : vector<64x128xf32>
    %17 = tpu.matmul %16, %15, %cst_11 {dimension_numbers = #tpu.dot_dimension_numbers<[1], [0], [0], [1], [0, 0, 1, 1], [], []>} : vector<64x64xf32>, vector<64x128xf32>, vector<64x128xf32> -> vector<64x128xf32>
    %c0_12 = arith.constant 0 : index
    %c0_13 = arith.constant 0 : index
    %18 = vector.load %arg5[%c0_12, %c0_13] : memref<64x1xf32, #tpu.memory_space<vmem>>, vector<64x1xf32>
    %19 = vector.broadcast %18 : vector<64x1xf32> to vector<64x128xf32>
    %20 = arith.addf %17, %19 : vector<64x128xf32>
    %cst_14 = arith.constant 0.000000e+00 : f32
    %21 = vector.broadcast %cst_14 : f32 to vector<64x128xf32>
    %22 = arith.cmpf ogt, %20, %21 : vector<64x128xf32>
    %23 = math.exp %20 : vector<64x128xf32>
    %cst_15 = arith.constant 1.000000e+00 : f32
    %24 = vector.broadcast %cst_15 : f32 to vector<64x128xf32>
    %25 = arith.subf %23, %24 : vector<64x128xf32>
    %cst_16 = arith.constant 1.67326319 : f32
    %26 = vector.broadcast %cst_16 : f32 to vector<64x128xf32>
    %27 = arith.mulf %26, %25 : vector<64x128xf32>
    %28 = arith.select %22, %20, %27 : vector<64x128xi1>, vector<64x128xf32>
    %cst_17 = arith.constant 1.05070102 : f32
    %29 = vector.broadcast %cst_17 : f32 to vector<64x128xf32>
    %30 = arith.mulf %29, %28 : vector<64x128xf32>
    %c0_18 = arith.constant 0 : index
    %c0_19 = arith.constant 0 : index
    %31 = vector.load %arg6[%c0_18, %c0_19] : memref<64x64xf32, #tpu.memory_space<vmem>>, vector<64x64xf32>
    %cst_20 = arith.constant dense<0.000000e+00> : vector<64x128xf32>
    %32 = tpu.matmul %31, %30, %cst_20 {dimension_numbers = #tpu.dot_dimension_numbers<[1], [0], [0], [1], [0, 0, 1, 1], [], []>} : vector<64x64xf32>, vector<64x128xf32>, vector<64x128xf32> -> vector<64x128xf32>
    %c0_21 = arith.constant 0 : index
    %c0_22 = arith.constant 0 : index
    %33 = vector.load %arg7[%c0_21, %c0_22] : memref<64x1xf32, #tpu.memory_space<vmem>>, vector<64x1xf32>
    %34 = vector.broadcast %33 : vector<64x1xf32> to vector<64x128xf32>
    %35 = arith.addf %32, %34 : vector<64x128xf32>
    %cst_23 = arith.constant 0.000000e+00 : f32
    %36 = vector.broadcast %cst_23 : f32 to vector<64x128xf32>
    %37 = arith.cmpf ogt, %35, %36 : vector<64x128xf32>
    %38 = math.exp %35 : vector<64x128xf32>
    %cst_24 = arith.constant 1.000000e+00 : f32
    %39 = vector.broadcast %cst_24 : f32 to vector<64x128xf32>
    %40 = arith.subf %38, %39 : vector<64x128xf32>
    %cst_25 = arith.constant 1.67326319 : f32
    %41 = vector.broadcast %cst_25 : f32 to vector<64x128xf32>
    %42 = arith.mulf %41, %40 : vector<64x128xf32>
    %43 = arith.select %37, %35, %42 : vector<64x128xi1>, vector<64x128xf32>
    %cst_26 = arith.constant 1.05070102 : f32
    %44 = vector.broadcast %cst_26 : f32 to vector<64x128xf32>
    %45 = arith.mulf %44, %43 : vector<64x128xf32>
    %c0_27 = arith.constant 0 : index
    %c0_28 = arith.constant 0 : index
    %46 = vector.load %arg8[%c0_27, %c0_28] : memref<2x64xf32, #tpu.memory_space<vmem>>, vector<2x64xf32>
    %cst_29 = arith.constant dense<0.000000e+00> : vector<2x128xf32>
    %47 = tpu.matmul %46, %45, %cst_29 {dimension_numbers = #tpu.dot_dimension_numbers<[1], [0], [0], [1], [0, 0, 1, 1], [], []>} : vector<2x64xf32>, vector<64x128xf32>, vector<2x128xf32> -> vector<2x128xf32>
    %c0_30 = arith.constant 0 : index
    %c0_31 = arith.constant 0 : index
    %48 = vector.load %arg9[%c0_30, %c0_31] : memref<2x1xf32, #tpu.memory_space<vmem>>, vector<2x1xf32>
    %49 = vector.broadcast %48 : vector<2x1xf32> to vector<2x128xf32>
    %50 = arith.addf %47, %49 : vector<2x128xf32>
    %c0_32 = arith.constant 0 : index
    %c0_33 = arith.constant 0 : index
    %51 = vector.load %arg10[%c0_32, %c0_33] : memref<2x128xf32, #tpu.memory_space<vmem>>, vector<2x128xf32>
    tpu.vector_store %arg10[%c0_32, %c0_33], %50 {strides = array<i32>} : memref<2x128xf32, #tpu.memory_space<vmem>>, vector<2x128xf32>,
    return
  }
  func.func @transform_0(%arg0: i32) -> (i32, i32) {
    %c0_i32 = arith.constant 0 : i32
    %c0_i32_0 = arith.constant 0 : i32
    return %c0_i32, %arg0 : i32, i32
  }
  func.func @transform_1(%arg0: i32) -> (i32, i32) {
    %c0_i32 = arith.constant 0 : i32
    %c0_i32_0 = arith.constant 0 : i32
    %c0_i32_1 = arith.constant 0 : i32
    return %c0_i32, %c0_i32_0 : i32, i32
  }
  func.func @transform_2(%arg0: i32) -> (i32, i32) {
    %c0_i32 = arith.constant 0 : i32
    %c0_i32_0 = arith.constant 0 : i32
    %c0_i32_1 = arith.constant 0 : i32
    return %c0_i32, %c0_i32_0 : i32, i32
  }
  func.func @transform_3(%arg0: i32) -> (i32, i32) {
    %c0_i32 = arith.constant 0 : i32
    %c0_i32_0 = arith.constant 0 : i32
    %c0_i32_1 = arith.constant 0 : i32
    return %c0_i32, %c0_i32_0 : i32, i32
  }
  func.func @transform_4(%arg0: i32) -> (i32, i32) {
    %c0_i32 = arith.constant 0 : i32
    %c0_i32_0 = arith.constant 0 : i32
    %c0_i32_1 = arith.constant 0 : i32
    return %c0_i32, %c0_i32_0 : i32, i32
  }
  func.func @transform_5(%arg0: i32) -> (i32, i32) {
    %c0_i32 = arith.constant 0 : i32
    %c0_i32_0 = arith.constant 0 : i32
    %c0_i32_1 = arith.constant 0 : i32
    return %c0_i32, %c0_i32_0 : i32, i32
  }
  func.func @transform_6(%arg0: i32) -> (i32, i32) {
    %c0_i32 = arith.constant 0 : i32
    %c0_i32_0 = arith.constant 0 : i32
    %c0_i32_1 = arith.constant 0 : i32
    return %c0_i32, %c0_i32_0 : i32, i32
  }
  func.func @transform_7(%arg0: i32) -> (i32, i32) {
    %c0_i32 = arith.constant 0 : i32
    %c0_i32_0 = arith.constant 0 : i32
    %c0_i32_1 = arith.constant 0 : i32
    return %c0_i32, %c0_i32_0 : i32, i32
  }
  func.func @transform_8(%arg0: i32) -> (i32, i32) {
    %c0_i32 = arith.constant 0 : i32
    %c0_i32_0 = arith.constant 0 : i32
    %c0_i32_1 = arith.constant 0 : i32
    return %c0_i32, %c0_i32_0 : i32, i32
  }
  func.func @transform_9(%arg0: i32) -> (i32, i32) {
    %c0_i32 = arith.constant 0 : i32
    %c0_i32_0 = arith.constant 0 : i32
    return %c0_i32, %arg0 : i32, i32
  }
}

</mosaic_0001>

<llo_original>
// kernel: tpu_custom_call.1
$region0: #{tpu_custom_call.1}
  #allocation0 [shape = 'u32[]', space=smem, size = 0x4, offset = 0x4, fixed_abs, tag = 'smem constant byte address 0x4 - core index']
  #allocation1 [shape = 'u32[144,128]{1,0:T(1,128)}', space=vmem, size = 0x12000, scoped, tag = 'internal scratch']
  %s0 = inlined_call_operand.vmem [shape: f32[2,128], index: 0, kind: input, shape index: {}]
  %s1 = inlined_call_operand.vmem [shape: f32[64,2], index: 1, kind: input, shape index: {}]
  %s2 = inlined_call_operand.vmem [shape: f32[64,1], index: 2, kind: input, shape index: {}]
  %s3 = inlined_call_operand.vmem [shape: f32[64,64], index: 3, kind: input, shape index: {}]
  %s4 = inlined_call_operand.vmem [shape: f32[64,1], index: 4, kind: input, shape index: {}]
  %s5 = inlined_call_operand.vmem [shape: f32[64,64], index: 5, kind: input, shape index: {}]
  %s6 = inlined_call_operand.vmem [shape: f32[64,1], index: 6, kind: input, shape index: {}]
  %s7 = inlined_call_operand.vmem [shape: f32[2,64], index: 7, kind: input, shape index: {}]
  %s8 = inlined_call_operand.vmem [shape: f32[2,1], index: 8, kind: input, shape index: {}]
  %s9 = inlined_call_operand.hbm [shape: f32[2,128], index: 9, kind: output, shape index: {}]
  %s10 = sld [smem:[#allocation0]]
  $region46: #{tpu_custom_call.1} parent=0
    _
  %s12 = ssub.s32 1, %s10
  %s13 = scalar_select 0, %s12, %s10
  $region1: #{tpu_custom_call.1} parent=0
    #allocation2 [shape = 'u8[1024]{0}', space=vmem, size = 0x400, scoped, tag = 'output window, operand 0, single buffered']
    #allocation3 [shape = 's32[1]{0}', space=sflag, size = 0x4, scoped, tag = 'scoped memory for tpu_custom_call.1']
    %14 = vsyncpa [#allocation3], 0
    // Predicated region
    $region2: #{tpu_custom_call.1} parent=1 // pred_check
      _
    $region3: #{tpu_custom_call.1} parent=1 // pred_check_branch
      %16 = sbr.rel (0) target = $region5
    $region4: #{tpu_custom_call.1} parent=1 // pred_region
      _
    $region5: #{tpu_custom_call.1} parent=1 // pred_fallthru
      _
    // Predicated region
    $region6: #{tpu_custom_call.1} parent=1 // pred_check
      _
    $region7: #{tpu_custom_call.1} parent=1 // pred_check_branch
      %18 = sbr.rel (0) target = $region9
    $region8: #{tpu_custom_call.1} parent=1 // pred_region
      _
    $region9: #{tpu_custom_call.1} parent=1 // pred_fallthru
      _
    // Predicated region
    $region10: #{tpu_custom_call.1} parent=1 // pred_check
      _
    $region11: #{tpu_custom_call.1} parent=1 // pred_check_branch
      %20 = sbr.rel (0) target = $region13
    $region12: #{tpu_custom_call.1} parent=1 // pred_region
      _
    $region13: #{tpu_custom_call.1} parent=1 // pred_fallthru
      _
    // Predicated region
    $region14: #{tpu_custom_call.1} parent=1 // pred_check
      _
    $region15: #{tpu_custom_call.1} parent=1 // pred_check_branch
      %22 = sbr.rel (0) target = $region17
    $region16: #{tpu_custom_call.1} parent=1 // pred_region
      _
    $region17: #{tpu_custom_call.1} parent=1 // pred_fallthru
      _
    // Predicated region
    $region18: #{tpu_custom_call.1} parent=1 // pred_check
      _
    $region19: #{tpu_custom_call.1} parent=1 // pred_check_branch
      %24 = sbr.rel (0) target = $region21
    $region20: #{tpu_custom_call.1} parent=1 // pred_region
      _
    $region21: #{tpu_custom_call.1} parent=1 // pred_fallthru
      _
    // Predicated region
    $region22: #{tpu_custom_call.1} parent=1 // pred_check
      _
    $region23: #{tpu_custom_call.1} parent=1 // pred_check_branch
      %26 = sbr.rel (0) target = $region25
    $region24: #{tpu_custom_call.1} parent=1 // pred_region
      _
    $region25: #{tpu_custom_call.1} parent=1 // pred_fallthru
      _
    // Predicated region
    $region26: #{tpu_custom_call.1} parent=1 // pred_check
      _
    $region27: #{tpu_custom_call.1} parent=1 // pred_check_branch
      %28 = sbr.rel (0) target = $region29
    $region28: #{tpu_custom_call.1} parent=1 // pred_region
      _
    $region29: #{tpu_custom_call.1} parent=1 // pred_fallthru
      _
    // Predicated region
    $region30: #{tpu_custom_call.1} parent=1 // pred_check
      _
    $region31: #{tpu_custom_call.1} parent=1 // pred_check_branch
      %30 = sbr.rel (0) target = $region33
    $region32: #{tpu_custom_call.1} parent=1 // pred_region
      _
    $region33: #{tpu_custom_call.1} parent=1 // pred_fallthru
      _
    // Predicated region
    $region34: #{tpu_custom_call.1} parent=1 // pred_check
      _
    $region35: #{tpu_custom_call.1} parent=1 // pred_check_branch
      %32 = sbr.rel (0) target = $region37
    $region36: #{tpu_custom_call.1} parent=1 // pred_region
      _
    $region37: #{tpu_custom_call.1} parent=1 // pred_fallthru
      _
    %v33 = vld [vmem:[%s0] sm:$0x3]
    %v34 = vld [vmem:[%s1] sm:$0xff]
    %v35 = vld [vmem:[%s1 + $0x8] sm:$0xff]
    %v36 = vld [vmem:[%s1 + $0x10] sm:$0xff]
    %v37 = vld [vmem:[%s1 + $0x18] sm:$0xff]
    %v38 = vld [vmem:[%s1 + $0x20] sm:$0xff]
    %v39 = vld [vmem:[%s1 + $0x28] sm:$0xff]
    %v40 = vld [vmem:[%s1 + $0x30] sm:$0xff]
    %v41 = vld [vmem:[%s1 + $0x38] sm:$0xff]
    %v42 = vld [vmem:[%s2] sm:$0xff]
    %v43 = vld [vmem:[%s2 + $0x8] sm:$0xff]
    %v44 = vld [vmem:[%s2 + $0x10] sm:$0xff]
    %v45 = vld [vmem:[%s2 + $0x18] sm:$0xff]
    %v46 = vld [vmem:[%s2 + $0x20] sm:$0xff]
    %v47 = vld [vmem:[%s2 + $0x28] sm:$0xff]
    %v48 = vld [vmem:[%s2 + $0x30] sm:$0xff]
    %v49 = vld [vmem:[%s2 + $0x38] sm:$0xff]
    %51 = vset.pattern.permute.xlu0 0
    %52 = vperm.xlu0 %51, %v42
    %v53 = vpop.permute.xlu0 %52
    %56 = vset.pattern.permute.xlu0 0
    %57 = vperm.xlu0 %56, %v43
    %v58 = vpop.permute.xlu0 %57
    %61 = vset.pattern.permute.xlu0 0
    %62 = vperm.xlu0 %61, %v44
    %v63 = vpop.permute.xlu0 %62
    %66 = vset.pattern.permute.xlu0 0
    %67 = vperm.xlu0 %66, %v45
    %v68 = vpop.permute.xlu0 %67
    %71 = vset.pattern.permute.xlu0 0
    %72 = vperm.xlu0 %71, %v46
    %v73 = vpop.permute.xlu0 %72
    %76 = vset.pattern.permute.xlu0 0
    %77 = vperm.xlu0 %76, %v47
    %v78 = vpop.permute.xlu0 %77
    %81 = vset.pattern.permute.xlu0 0
    %82 = vperm.xlu0 %81, %v48
    %v83 = vpop.permute.xlu0 %82
    %86 = vset.pattern.permute.xlu0 0
    %87 = vperm.xlu0 %86, %v49
    %v88 = vpop.permute.xlu0 %87
    %vm90 = vcmask 15360
    %v92 = vsel %vm90, %v34, 0
    %v95 = vsel %vm90, %v35, 0
    %v98 = vsel %vm90, %v36, 0
    %v101 = vsel %vm90, %v37, 0
    %v104 = vsel %vm90, %v38, 0
    %v107 = vsel %vm90, %v39, 0
    %v110 = vsel %vm90, %v40, 0
    %v113 = vsel %vm90, %v41, 0
    %vm115 = vcmask 1041408
    %v117 = vsel %vm115, %v33, 0
    %119 = vmatprep.subr.mxu0 0.0
    %120 = vmatpush1.msra.mxu0 %v117
    %121 = vmatprep.subr.mxu0 0.0
    %122 = vmatpush1.msra.mxu0 0.0
    %123 = vmatprep.subr.mxu0 0.0
    %124 = vmatpush1.msra.mxu0 0.0
    %125 = vmatprep.subr.mxu0 0.0
    %126 = vmatpush1.msra.mxu0 0.0
    %127 = vmatprep.subr.mxu0 0.0
    %128 = vmatpush1.msra.mxu0 0.0
    %129 = vmatprep.subr.mxu0 0.0
    %130 = vmatpush1.msra.mxu0 0.0
    %131 = vmatprep.subr.mxu0 0.0
    %132 = vmatpush1.msra.mxu0 0.0
    %133 = vmatprep.subr.mxu0 0.0
    %134 = vmatpush1.msra.mxu0 0.0
    %135 = vmatprep.subr.mxu0 0.0
    %136 = vmatpush1.msra.mxu0 0.0
    %137 = vmatprep.subr.mxu0 0.0
    %138 = vmatpush1.msra.mxu0 0.0
    %139 = vmatprep.subr.mxu0 0.0
    %140 = vmatpush1.msra.mxu0 0.0
    %141 = vmatprep.subr.mxu0 0.0
    %142 = vmatpush1.msra.mxu0 0.0
    %143 = vmatprep.subr.mxu0 0.0
    %144 = vmatpush1.msra.mxu0 0.0
    %145 = vmatprep.subr.mxu0 0.0
    %146 = vmatpush1.msra.mxu0 0.0
    %147 = vmatprep.subr.mxu0 0.0
    %148 = vmatpush1.msra.mxu0 0.0
    %149 = vmatprep.subr.mxu0 0.0
    %150 = vmatpush1.msra.mxu0 0.0
    %151 = vmatprep.subr.mxu0 0.0
    %152 = vmatpush1.msra.mxu0 0.0
    %153 = vmatprep.subr.mxu0 0.0
    %154 = vmatpush1.msra.mxu0 0.0
    %155 = vmatprep.subr.mxu0 0.0
    %156 = vmatpush1.msra.mxu0 0.0
    %157 = vmatprep.subr.mxu0 0.0
    %158 = vmatpush1.msra.mxu0 0.0
    %159 = vmatprep.subr.mxu0 0.0
    %160 = vmatpush1.msra.mxu0 0.0
    %161 = vmatprep.subr.mxu0 0.0
    %162 = vmatpush1.msra.mxu0 0.0
    %163 = vmatprep.subr.mxu0 0.0
    %164 = vmatpush1.msra.mxu0 0.0
    %165 = vmatprep.subr.mxu0 0.0
    %166 = vmatpush1.msra.mxu0 0.0
    %167 = vmatprep.subr.mxu0 0.0
    %168 = vmatpush1.msra.mxu0 0.0
    %169 = vmatprep.subr.mxu0 0.0
    %170 = vmatpush1.msra.mxu0 0.0
    %171 = vmatprep.subr.mxu0 0.0
    %172 = vmatpush1.msra.mxu0 0.0
    %173 = vmatprep.subr.mxu0 0.0
    %174 = vmatpush1.msra.mxu0 0.0
    %175 = vmatprep.subr.mxu0 0.0
    %176 = vmatpush1.msra.mxu0 0.0
    %177 = vmatprep.subr.mxu0 0.0
    %178 = vmatpush1.msra.mxu0 0.0
    %179 = vmatprep.subr.mxu0 0.0
    %180 = vmatpush1.msra.mxu0 0.0
    %181 = vmatprep.subr.mxu0 0.0
    %182 = vmatpush1.msra.mxu0 0.0
    %183 = vmatprep.mubr.f32.mxu0 0.0
    %184 = vmatmul.mubr.f32.gmra.mrb[0].mxu0 %v92
    %v185 = vpop.f32.mrb[0].mxu0
    %v186 = vadd.f32 %v53, %v185
    %v187 = vpop.f32.mrb[0].mxu0
    %188 = vmatprep.mubr.f32.mxu0 0.0
    %189 = vmatmul.mubr.f32.gmra.mrb[0].mxu0 %v95
    %v190 = vpop.f32.mrb[0].mxu0
    %v191 = vadd.f32 %v58, %v190
    %v192 = vpop.f32.mrb[0].mxu0
    %193 = vmatprep.mubr.f32.mxu0 0.0
    %194 = vmatmul.mubr.f32.gmra.mrb[0].mxu0 %v98
    %v195 = vpop.f32.mrb[0].mxu0
    %v196 = vadd.f32 %v63, %v195
    %v197 = vpop.f32.mrb[0].mxu0
    %198 = vmatprep.mubr.f32.mxu0 0.0
    %199 = vmatmul.mubr.f32.gmra.mrb[0].mxu0 %v101
    %v200 = vpop.f32.mrb[0].mxu0
    %v201 = vadd.f32 %v68, %v200
    %v202 = vpop.f32.mrb[0].mxu0
    %203 = vmatprep.mubr.f32.mxu0 0.0
    %204 = vmatmul.mubr.f32.gmra.mrb[0].mxu0 %v104
    %v205 = vpop.f32.mrb[0].mxu0
    %v206 = vadd.f32 %v73, %v205
    %v207 = vpop.f32.mrb[0].mxu0
    %208 = vmatprep.mubr.f32.mxu0 0.0
    %209 = vmatmul.mubr.f32.gmra.mrb[0].mxu0 %v107
    %v210 = vpop.f32.mrb[0].mxu0
    %v211 = vadd.f32 %v78, %v210
    %v212 = vpop.f32.mrb[0].mxu0
    %213 = vmatprep.mubr.f32.mxu0 0.0
    %214 = vmatmul.mubr.f32.gmra.mrb[0].mxu0 %v110
    %v215 = vpop.f32.mrb[0].mxu0
    %v216 = vadd.f32 %v83, %v215
    %v217 = vpop.f32.mrb[0].mxu0
    %218 = vmatprep.mubr.f32.mxu0 0.0
    %219 = vmatmul.mubr.f32.gmra.mrb[0].mxu0 %v113
    %v220 = vpop.f32.mrb[0].mxu0
    %v221 = vadd.f32 %v88, %v220
    %v222 = vpop.f32.mrb[0].mxu0
    %223 = vdwg.mxu0
    %vm224 = vcmp.gt.f32.partialorder %v186, 0.0
    %vm225 = vcmp.gt.f32.partialorder %v191, 0.0
    %vm226 = vcmp.gt.f32.partialorder %v196, 0.0
    %vm227 = vcmp.gt.f32.partialorder %v201, 0.0
    %vm228 = vcmp.gt.f32.partialorder %v206, 0.0
    %vm229 = vcmp.gt.f32.partialorder %v211, 0.0
    %vm230 = vcmp.gt.f32.partialorder %v216, 0.0
    %vm231 = vcmp.gt.f32.partialorder %v221, 0.0
    %v232 = vmul.f32 %v186, 1.442695
    %v233 = vpow.pop %v232
    %v234 = vmul.f32 %v191, 1.442695
    %v235 = vpow.pop %v234
    %v236 = vmul.f32 %v196, 1.442695
    %v237 = vpow.pop %v236
    %v238 = vmul.f32 %v201, 1.442695
    %v239 = vpow.pop %v238
    %v240 = vmul.f32 %v206, 1.442695
    %v241 = vpow.pop %v240
    %v242 = vmul.f32 %v211, 1.442695
    %v243 = vpow.pop %v242
    %v244 = vmul.f32 %v216, 1.442695
    %v245 = vpow.pop %v244
    %v246 = vmul.f32 %v221, 1.442695
    %v247 = vpow.pop %v246
    %v248 = vsub.f32 %v233, 1.0
    %v249 = vsub.f32 %v235, 1.0
    %v250 = vsub.f32 %v237, 1.0
    %v251 = vsub.f32 %v239, 1.0
    %v252 = vsub.f32 %v241, 1.0
    %v253 = vsub.f32 %v243, 1.0
    %v254 = vsub.f32 %v245, 1.0
    %v255 = vsub.f32 %v247, 1.0
    %v256 = vmul.f32 %v248, 1.6732632
    %v257 = vmul.f32 %v249, 1.6732632
    %v258 = vmul.f32 %v250, 1.6732632
    %v259 = vmul.f32 %v251, 1.6732632
    %v260 = vmul.f32 %v252, 1.6732632
    %v261 = vmul.f32 %v253, 1.6732632
    %v262 = vmul.f32 %v254, 1.6732632
    %v263 = vmul.f32 %v255, 1.6732632
    %v264 = vsel %vm224, %v186, %v256
    %v265 = vsel %vm225, %v191, %v257
    %v266 = vsel %vm226, %v196, %v258
    %v267 = vsel %vm227, %v201, %v259
    %v268 = vsel %vm228, %v206, %v260
    %v269 = vsel %vm229, %v211, %v261
    %v270 = vsel %vm230, %v216, %v262
    %v271 = vsel %vm231, %v221, %v263
    %v272 = vmul.f32 %v264, 1.050701
    %v273 = vmul.f32 %v265, 1.050701
    %v274 = vmul.f32 %v266, 1.050701
    %v275 = vmul.f32 %v267, 1.050701
    %v276 = vmul.f32 %v268, 1.050701
    %v277 = vmul.f32 %v269, 1.050701
    %v278 = vmul.f32 %v270, 1.050701
    %v279 = vmul.f32 %v271, 1.050701
    %v280 = vld [vmem:[%s3] sm:$0xff]
    %v281 = vld [vmem:[%s3 + $0x8] sm:$0xff]
    %v282 = vld [vmem:[%s3 + $0x10] sm:$0xff]
    %v283 = vld [vmem:[%s3 + $0x18] sm:$0xff]
    %v284 = vld [vmem:[%s3 + $0x20] sm:$0xff]
    %v285 = vld [vmem:[%s3 + $0x28] sm:$0xff]
    %v286 = vld [vmem:[%s3 + $0x30] sm:$0xff]
    %v287 = vld [vmem:[%s3 + $0x38] sm:$0xff]
    %v288 = vld [vmem:[%s4] sm:$0xff]
    %v289 = vld [vmem:[%s4 + $0x8] sm:$0xff]
    %v290 = vld [vmem:[%s4 + $0x10] sm:$0xff]
    %v291 = vld [vmem:[%s4 + $0x18] sm:$0xff]
    %v292 = vld [vmem:[%s4 + $0x20] sm:$0xff]
    %v293 = vld [vmem:[%s4 + $0x28] sm:$0xff]
    %v294 = vld [vmem:[%s4 + $0x30] sm:$0xff]
    %v295 = vld [vmem:[%s4 + $0x38] sm:$0xff]
    %297 = vset.pattern.permute.xlu0 0
    %298 = vperm.xlu0 %297, %v288
    %v299 = vpop.permute.xlu0 %298
    %302 = vset.pattern.permute.xlu0 0
    %303 = vperm.xlu0 %302, %v289
    %v304 = vpop.permute.xlu0 %303
    %307 = vset.pattern.permute.xlu0 0
    %308 = vperm.xlu0 %307, %v290
    %v309 = vpop.permute.xlu0 %308
    %312 = vset.pattern.permute.xlu0 0
    %313 = vperm.xlu0 %312, %v291
    %v314 = vpop.permute.xlu0 %313
    %317 = vset.pattern.permute.xlu0 0
    %318 = vperm.xlu0 %317, %v292
    %v319 = vpop.permute.xlu0 %318
    %322 = vset.pattern.permute.xlu0 0
    %323 = vperm.xlu0 %322, %v293
    %v324 = vpop.permute.xlu0 %323
    %327 = vset.pattern.permute.xlu0 0
    %328 = vperm.xlu0 %327, %v294
    %v329 = vpop.permute.xlu0 %328
    %332 = vset.pattern.permute.xlu0 0
    %333 = vperm.xlu0 %332, %v295
    %v334 = vpop.permute.xlu0 %333
    %vm336 = vcmask 523264
    %v338 = vsel %vm336, %v280, 0
    %v341 = vsel %vm336, %v281, 0
    %v344 = vsel %vm336, %v282, 0
    %v347 = vsel %vm336, %v283, 0
    %v350 = vsel %vm336, %v284, 0
    %v353 = vsel %vm336, %v285, 0
    %v356 = vsel %vm336, %v286, 0
    %v359 = vsel %vm336, %v287, 0
    %361 = vmatprep.subr.mxu0 0.0
    %362 = vmatpush1.msra.mxu0 %v272
    %363 = vmatprep.subr.mxu0 0.0
    %364 = vmatpush1.msra.mxu0 %v273
    %365 = vmatprep.subr.mxu0 0.0
    %366 = vmatpush1.msra.mxu0 %v274
    %367 = vmatprep.subr.mxu0 0.0
    %368 = vmatpush1.msra.mxu0 %v275
    %369 = vmatprep.subr.mxu0 0.0
    %370 = vmatpush1.msra.mxu0 %v276
    %371 = vmatprep.subr.mxu0 0.0
    %372 = vmatpush1.msra.mxu0 %v277
    %373 = vmatprep.subr.mxu0 0.0
    %374 = vmatpush1.msra.mxu0 %v278
    %375 = vmatprep.subr.mxu0 0.0
    %376 = vmatpush1.msra.mxu0 %v279
    %377 = vmatprep.subr.mxu0 0.0
    %378 = vmatpush1.msra.mxu0 0.0
    %379 = vmatprep.subr.mxu0 0.0
    %380 = vmatpush1.msra.mxu0 0.0
    %381 = vmatprep.subr.mxu0 0.0
    %382 = vmatpush1.msra.mxu0 0.0
    %383 = vmatprep.subr.mxu0 0.0
    %384 = vmatpush1.msra.mxu0 0.0
    %385 = vmatprep.subr.mxu0 0.0
    %386 = vmatpush1.msra.mxu0 0.0
    %387 = vmatprep.subr.mxu0 0.0
    %388 = vmatpush1.msra.mxu0 0.0
    %389 = vmatprep.subr.mxu0 0.0
    %390 = vmatpush1.msra.mxu0 0.0
    %391 = vmatprep.subr.mxu0 0.0
    %392 = vmatpush1.msra.mxu0 0.0
    %393 = vmatprep.subr.mxu0 0.0
    %394 = vmatpush1.msra.mxu0 0.0
    %395 = vmatprep.subr.mxu0 0.0
    %396 = vmatpush1.msra.mxu0 0.0
    %397 = vmatprep.subr.mxu0 0.0
    %398 = vmatpush1.msra.mxu0 0.0
    %399 = vmatprep.subr.mxu0 0.0
    %400 = vmatpush1.msra.mxu0 0.0
    %401 = vmatprep.subr.mxu0 0.0
    %402 = vmatpush1.msra.mxu0 0.0
    %403 = vmatprep.subr.mxu0 0.0
    %404 = vmatpush1.msra.mxu0 0.0
    %405 = vmatprep.subr.mxu0 0.0
    %406 = vmatpush1.msra.mxu0 0.0
    %407 = vmatprep.subr.mxu0 0.0
    %408 = vmatpush1.msra.mxu0 0.0
    %409 = vmatprep.subr.mxu0 0.0
    %410 = vmatpush1.msra.mxu0 0.0
    %411 = vmatprep.subr.mxu0 0.0
    %412 = vmatpush1.msra.mxu0 0.0
    %413 = vmatprep.subr.mxu0 0.0
    %414 = vmatpush1.msra.mxu0 0.0
    %415 = vmatprep.subr.mxu0 0.0
    %416 = vmatpush1.msra.mxu0 0.0
    %417 = vmatprep.subr.mxu0 0.0
    %418 = vmatpush1.msra.mxu0 0.0
    %419 = vmatprep.subr.mxu0 0.0
    %420 = vmatpush1.msra.mxu0 0.0
    %421 = vmatprep.subr.mxu0 0.0
    %422 = vmatpush1.msra.mxu0 0.0
    %423 = vmatprep.subr.mxu0 0.0
    %424 = vmatpush1.msra.mxu0 0.0
    %425 = vmatprep.mubr.f32.mxu0 0.0
    %426 = vmatmul.mubr.f32.gmra.mrb[0].mxu0 %v338
    %v427 = vpop.f32.mrb[0].mxu0
    %v428 = vadd.f32 %v299, %v427
    %v429 = vpop.f32.mrb[0].mxu0
    %430 = vmatprep.mubr.f32.mxu0 0.0
    %431 = vmatmul.mubr.f32.gmra.mrb[0].mxu0 %v341
    %v432 = vpop.f32.mrb[0].mxu0
    %v433 = vadd.f32 %v304, %v432
    %v434 = vpop.f32.mrb[0].mxu0
    %435 = vmatprep.mubr.f32.mxu0 0.0
    %436 = vmatmul.mubr.f32.gmra.mrb[0].mxu0 %v344
    %v437 = vpop.f32.mrb[0].mxu0
    %v438 = vadd.f32 %v309, %v437
    %v439 = vpop.f32.mrb[0].mxu0
    %440 = vmatprep.mubr.f32.mxu0 0.0
    %441 = vmatmul.mubr.f32.gmra.mrb[0].mxu0 %v347
    %v442 = vpop.f32.mrb[0].mxu0
    %v443 = vadd.f32 %v314, %v442
    %v444 = vpop.f32.mrb[0].mxu0
    %445 = vmatprep.mubr.f32.mxu0 0.0
    %446 = vmatmul.mubr.f32.gmra.mrb[0].mxu0 %v350
    %v447 = vpop.f32.mrb[0].mxu0
    %v448 = vadd.f32 %v319, %v447
    %v449 = vpop.f32.mrb[0].mxu0
    %450 = vmatprep.mubr.f32.mxu0 0.0
    %451 = vmatmul.mubr.f32.gmra.mrb[0].mxu0 %v353
    %v452 = vpop.f32.mrb[0].mxu0
    %v453 = vadd.f32 %v324, %v452
    %v454 = vpop.f32.mrb[0].mxu0
    %455 = vmatprep.mubr.f32.mxu0 0.0
    %456 = vmatmul.mubr.f32.gmra.mrb[0].mxu0 %v356
    %v457 = vpop.f32.mrb[0].mxu0
    %v458 = vadd.f32 %v329, %v457
    %v459 = vpop.f32.mrb[0].mxu0
    %460 = vmatprep.mubr.f32.mxu0 0.0
    %461 = vmatmul.mubr.f32.gmra.mrb[0].mxu0 %v359
    %v462 = vpop.f32.mrb[0].mxu0
    %v463 = vadd.f32 %v334, %v462
    %v464 = vpop.f32.mrb[0].mxu0
    %465 = vdwg.mxu0
    %vm466 = vcmp.gt.f32.partialorder %v428, 0.0
    %vm467 = vcmp.gt.f32.partialorder %v433, 0.0
    %vm468 = vcmp.gt.f32.partialorder %v438, 0.0
    %vm469 = vcmp.gt.f32.partialorder %v443, 0.0
    %vm470 = vcmp.gt.f32.partialorder %v448, 0.0
    %vm471 = vcmp.gt.f32.partialorder %v453, 0.0
    %vm472 = vcmp.gt.f32.partialorder %v458, 0.0
    %vm473 = vcmp.gt.f32.partialorder %v463, 0.0
    %v474 = vmul.f32 %v428, 1.442695
    %v475 = vpow.pop %v474
    %v476 = vmul.f32 %v433, 1.442695
    %v477 = vpow.pop %v476
    %v478 = vmul.f32 %v438, 1.442695
    %v479 = vpow.pop %v478
    %v480 = vmul.f32 %v443, 1.442695
    %v481 = vpow.pop %v480
    %v482 = vmul.f32 %v448, 1.442695
    %v483 = vpow.pop %v482
    %v484 = vmul.f32 %v453, 1.442695
    %v485 = vpow.pop %v484
    %v486 = vmul.f32 %v458, 1.442695
    %v487 = vpow.pop %v486
    %v488 = vmul.f32 %v463, 1.442695
    %v489 = vpow.pop %v488
    %v490 = vsub.f32 %v475, 1.0
    %v491 = vsub.f32 %v477, 1.0
    %v492 = vsub.f32 %v479, 1.0
    %v493 = vsub.f32 %v481, 1.0
    %v494 = vsub.f32 %v483, 1.0
    %v495 = vsub.f32 %v485, 1.0
    %v496 = vsub.f32 %v487, 1.0
    %v497 = vsub.f32 %v489, 1.0
    %v498 = vmul.f32 %v490, 1.6732632
    %v499 = vmul.f32 %v491, 1.6732632
    %v500 = vmul.f32 %v492, 1.6732632
    %v501 = vmul.f32 %v493, 1.6732632
    %v502 = vmul.f32 %v494, 1.6732632
    %v503 = vmul.f32 %v495, 1.6732632
    %v504 = vmul.f32 %v496, 1.6732632
    %v505 = vmul.f32 %v497, 1.6732632
    %v506 = vsel %vm466, %v428, %v498
    %v507 = vsel %vm467, %v433, %v499
    %v508 = vsel %vm468, %v438, %v500
    %v509 = vsel %vm469, %v443, %v501
    %v510 = vsel %vm470, %v448, %v502
    %v511 = vsel %vm471, %v453, %v503
    %v512 = vsel %vm472, %v458, %v504
    %v513 = vsel %vm473, %v463, %v505
    %v514 = vmul.f32 %v506, 1.050701
    %v515 = vmul.f32 %v507, 1.050701
    %v516 = vmul.f32 %v508, 1.050701
    %v517 = vmul.f32 %v509, 1.050701
    %v518 = vmul.f32 %v510, 1.050701
    %v519 = vmul.f32 %v511, 1.050701
    %v520 = vmul.f32 %v512, 1.050701
    %v521 = vmul.f32 %v513, 1.050701
    %v522 = vld [vmem:[%s5] sm:$0xff]
    %v523 = vld [vmem:[%s5 + $0x8] sm:$0xff]
    %v524 = vld [vmem:[%s5 + $0x10] sm:$0xff]
    %v525 = vld [vmem:[%s5 + $0x18] sm:$0xff]
    %v526 = vld [vmem:[%s5 + $0x20] sm:$0xff]
    %v527 = vld [vmem:[%s5 + $0x28] sm:$0xff]
    %v528 = vld [vmem:[%s5 + $0x30] sm:$0xff]
    %v529 = vld [vmem:[%s5 + $0x38] sm:$0xff]
    %v530 = vld [vmem:[%s6] sm:$0xff]
    %v531 = vld [vmem:[%s6 + $0x8] sm:$0xff]
    %v532 = vld [vmem:[%s6 + $0x10] sm:$0xff]
    %v533 = vld [vmem:[%s6 + $0x18] sm:$0xff]
    %v534 = vld [vmem:[%s6 + $0x20] sm:$0xff]
    %v535 = vld [vmem:[%s6 + $0x28] sm:$0xff]
    %v536 = vld [vmem:[%s6 + $0x30] sm:$0xff]
    %v537 = vld [vmem:[%s6 + $0x38] sm:$0xff]
    %539 = vset.pattern.permute.xlu0 0
    %540 = vperm.xlu0 %539, %v530
    %v541 = vpop.permute.xlu0 %540
    %544 = vset.pattern.permute.xlu0 0
    %545 = vperm.xlu0 %544, %v531
    %v546 = vpop.permute.xlu0 %545
    %549 = vset.pattern.permute.xlu0 0
    %550 = vperm.xlu0 %549, %v532
    %v551 = vpop.permute.xlu0 %550
    %554 = vset.pattern.permute.xlu0 0
    %555 = vperm.xlu0 %554, %v533
    %v556 = vpop.permute.xlu0 %555
    %559 = vset.pattern.permute.xlu0 0
    %560 = vperm.xlu0 %559, %v534
    %v561 = vpop.permute.xlu0 %560
    %564 = vset.pattern.permute.xlu0 0
    %565 = vperm.xlu0 %564, %v535
    %v566 = vpop.permute.xlu0 %565
    %569 = vset.pattern.permute.xlu0 0
    %570 = vperm.xlu0 %569, %v536
    %v571 = vpop.permute.xlu0 %570
    %574 = vset.pattern.permute.xlu0 0
    %575 = vperm.xlu0 %574, %v537
    %v576 = vpop.permute.xlu0 %575
    %v579 = vsel %vm336, %v522, 0
    %v582 = vsel %vm336, %v523, 0
    %v585 = vsel %vm336, %v524, 0
    %v588 = vsel %vm336, %v525, 0
    %v591 = vsel %vm336, %v526, 0
    %v594 = vsel %vm336, %v527, 0
    %v597 = vsel %vm336, %v528, 0
    %v600 = vsel %vm336, %v529, 0
    %602 = vmatprep.subr.mxu0 0.0
    %603 = vmatpush1.msra.mxu0 %v514
    %604 = vmatprep.subr.mxu0 0.0
    %605 = vmatpush1.msra.mxu0 %v515
    %606 = vmatprep.subr.mxu0 0.0
    %607 = vmatpush1.msra.mxu0 %v516
    %608 = vmatprep.subr.mxu0 0.0
    %609 = vmatpush1.msra.mxu0 %v517
    %610 = vmatprep.subr.mxu0 0.0
    %611 = vmatpush1.msra.mxu0 %v518
    %612 = vmatprep.subr.mxu0 0.0
    %613 = vmatpush1.msra.mxu0 %v519
    %614 = vmatprep.subr.mxu0 0.0
    %615 = vmatpush1.msra.mxu0 %v520
    %616 = vmatprep.subr.mxu0 0.0
    %617 = vmatpush1.msra.mxu0 %v521
    %618 = vmatprep.subr.mxu0 0.0
    %619 = vmatpush1.msra.mxu0 0.0
    %620 = vmatprep.subr.mxu0 0.0
    %621 = vmatpush1.msra.mxu0 0.0
    %622 = vmatprep.subr.mxu0 0.0
    %623 = vmatpush1.msra.mxu0 0.0
    %624 = vmatprep.subr.mxu0 0.0
    %625 = vmatpush1.msra.mxu0 0.0
    %626 = vmatprep.subr.mxu0 0.0
    %627 = vmatpush1.msra.mxu0 0.0
    %628 = vmatprep.subr.mxu0 0.0
    %629 = vmatpush1.msra.mxu0 0.0
    %630 = vmatprep.subr.mxu0 0.0
    %631 = vmatpush1.msra.mxu0 0.0
    %632 = vmatprep.subr.mxu0 0.0
    %633 = vmatpush1.msra.mxu0 0.0
    %634 = vmatprep.subr.mxu0 0.0
    %635 = vmatpush1.msra.mxu0 0.0
    %636 = vmatprep.subr.mxu0 0.0
    %637 = vmatpush1.msra.mxu0 0.0
    %638 = vmatprep.subr.mxu0 0.0
    %639 = vmatpush1.msra.mxu0 0.0
    %640 = vmatprep.subr.mxu0 0.0
    %641 = vmatpush1.msra.mxu0 0.0
    %642 = vmatprep.subr.mxu0 0.0
    %643 = vmatpush1.msra.mxu0 0.0
    %644 = vmatprep.subr.mxu0 0.0
    %645 = vmatpush1.msra.mxu0 0.0
    %646 = vmatprep.subr.mxu0 0.0
    %647 = vmatpush1.msra.mxu0 0.0
    %648 = vmatprep.subr.mxu0 0.0
    %649 = vmatpush1.msra.mxu0 0.0
    %650 = vmatprep.subr.mxu0 0.0
    %651 = vmatpush1.msra.mxu0 0.0
    %652 = vmatprep.subr.mxu0 0.0
    %653 = vmatpush1.msra.mxu0 0.0
    %654 = vmatprep.subr.mxu0 0.0
    %655 = vmatpush1.msra.mxu0 0.0
    %656 = vmatprep.subr.mxu0 0.0
    %657 = vmatpush1.msra.mxu0 0.0
    %658 = vmatprep.subr.mxu0 0.0
    %659 = vmatpush1.msra.mxu0 0.0
    %660 = vmatprep.subr.mxu0 0.0
    %661 = vmatpush1.msra.mxu0 0.0
    %662 = vmatprep.subr.mxu0 0.0
    %663 = vmatpush1.msra.mxu0 0.0
    %664 = vmatprep.subr.mxu0 0.0
    %665 = vmatpush1.msra.mxu0 0.0
    %666 = vmatprep.mubr.f32.mxu0 0.0
    %667 = vmatmul.mubr.f32.gmra.mrb[0].mxu0 %v579
    %v668 = vpop.f32.mrb[0].mxu0
    %v669 = vadd.f32 %v541, %v668
    %v670 = vpop.f32.mrb[0].mxu0
    %671 = vmatprep.mubr.f32.mxu0 0.0
    %672 = vmatmul.mubr.f32.gmra.mrb[0].mxu0 %v582
    %v673 = vpop.f32.mrb[0].mxu0
    %v674 = vadd.f32 %v546, %v673
    %v675 = vpop.f32.mrb[0].mxu0
    %676 = vmatprep.mubr.f32.mxu0 0.0
    %677 = vmatmul.mubr.f32.gmra.mrb[0].mxu0 %v585
    %v678 = vpop.f32.mrb[0].mxu0
    %v679 = vadd.f32 %v551, %v678
    %v680 = vpop.f32.mrb[0].mxu0
    %681 = vmatprep.mubr.f32.mxu0 0.0
    %682 = vmatmul.mubr.f32.gmra.mrb[0].mxu0 %v588
    %v683 = vpop.f32.mrb[0].mxu0
    %v684 = vadd.f32 %v556, %v683
    %v685 = vpop.f32.mrb[0].mxu0
    %686 = vmatprep.mubr.f32.mxu0 0.0
    %687 = vmatmul.mubr.f32.gmra.mrb[0].mxu0 %v591
    %v688 = vpop.f32.mrb[0].mxu0
    %v689 = vadd.f32 %v561, %v688
    %v690 = vpop.f32.mrb[0].mxu0
    %691 = vmatprep.mubr.f32.mxu0 0.0
    %692 = vmatmul.mubr.f32.gmra.mrb[0].mxu0 %v594
    %v693 = vpop.f32.mrb[0].mxu0
    %v694 = vadd.f32 %v566, %v693
    %v695 = vpop.f32.mrb[0].mxu0
    %696 = vmatprep.mubr.f32.mxu0 0.0
    %697 = vmatmul.mubr.f32.gmra.mrb[0].mxu0 %v597
    %v698 = vpop.f32.mrb[0].mxu0
    %v699 = vadd.f32 %v571, %v698
    %v700 = vpop.f32.mrb[0].mxu0
    %701 = vmatprep.mubr.f32.mxu0 0.0
    %702 = vmatmul.mubr.f32.gmra.mrb[0].mxu0 %v600
    %v703 = vpop.f32.mrb[0].mxu0
    %v704 = vadd.f32 %v576, %v703
    %v705 = vpop.f32.mrb[0].mxu0
    %706 = vdwg.mxu0
    %vm707 = vcmp.gt.f32.partialorder %v669, 0.0
    %vm708 = vcmp.gt.f32.partialorder %v674, 0.0
    %vm709 = vcmp.gt.f32.partialorder %v679, 0.0
    %vm710 = vcmp.gt.f32.partialorder %v684, 0.0
    %vm711 = vcmp.gt.f32.partialorder %v689, 0.0
    %vm712 = vcmp.gt.f32.partialorder %v694, 0.0
    %vm713 = vcmp.gt.f32.partialorder %v699, 0.0
    %vm714 = vcmp.gt.f32.partialorder %v704, 0.0
    %v715 = vmul.f32 %v669, 1.442695
    %v716 = vpow.pop %v715
    %v717 = vmul.f32 %v674, 1.442695
    %v718 = vpow.pop %v717
    %v719 = vmul.f32 %v679, 1.442695
    %v720 = vpow.pop %v719
    %v721 = vmul.f32 %v684, 1.442695
    %v722 = vpow.pop %v721
    %v723 = vmul.f32 %v689, 1.442695
    %v724 = vpow.pop %v723
    %v725 = vmul.f32 %v694, 1.442695
    %v726 = vpow.pop %v725
    %v727 = vmul.f32 %v699, 1.442695
    %v728 = vpow.pop %v727
    %v729 = vmul.f32 %v704, 1.442695
    %v730 = vpow.pop %v729
    %v731 = vsub.f32 %v716, 1.0
    %v732 = vsub.f32 %v718, 1.0
    %v733 = vsub.f32 %v720, 1.0
    %v734 = vsub.f32 %v722, 1.0
    %v735 = vsub.f32 %v724, 1.0
    %v736 = vsub.f32 %v726, 1.0
    %v737 = vsub.f32 %v728, 1.0
    %v738 = vsub.f32 %v730, 1.0
    %v739 = vmul.f32 %v731, 1.6732632
    %v740 = vmul.f32 %v732, 1.6732632
    %v741 = vmul.f32 %v733, 1.6732632
    %v742 = vmul.f32 %v734, 1.6732632
    %v743 = vmul.f32 %v735, 1.6732632
    %v744 = vmul.f32 %v736, 1.6732632
    %v745 = vmul.f32 %v737, 1.6732632
    %v746 = vmul.f32 %v738, 1.6732632
    %v747 = vsel %vm707, %v669, %v739
    %v748 = vsel %vm708, %v674, %v740
    %v749 = vsel %vm709, %v679, %v741
    %v750 = vsel %vm710, %v684, %v742
    %v751 = vsel %vm711, %v689, %v743
    %v752 = vsel %vm712, %v694, %v744
    %v753 = vsel %vm713, %v699, %v745
    %v754 = vsel %vm714, %v704, %v746
    %v755 = vmul.f32 %v747, 1.050701
    %v756 = vmul.f32 %v748, 1.050701
    %v757 = vmul.f32 %v749, 1.050701
    %v758 = vmul.f32 %v750, 1.050701
    %v759 = vmul.f32 %v751, 1.050701
    %v760 = vmul.f32 %v752, 1.050701
    %v761 = vmul.f32 %v753, 1.050701
    %v762 = vmul.f32 %v754, 1.050701
    %v763 = vld [vmem:[%s7] sm:$0x3]
    %v764 = vld [vmem:[%s8] sm:$0x3]
    %766 = vset.pattern.permute.xlu0 0
    %767 = vperm.xlu0 %766, %v764
    %v768 = vpop.permute.xlu0 %767
    %v771 = vsel %vm336, %v763, 0
    %773 = vmatprep.subr.mxu0 0.0
    %774 = vmatpush1.msra.mxu0 %v755
    %775 = vmatprep.subr.mxu0 0.0
    %776 = vmatpush1.msra.mxu0 %v756
    %777 = vmatprep.subr.mxu0 0.0
    %778 = vmatpush1.msra.mxu0 %v757
    %779 = vmatprep.subr.mxu0 0.0
    %780 = vmatpush1.msra.mxu0 %v758
    %781 = vmatprep.subr.mxu0 0.0
    %782 = vmatpush1.msra.mxu0 %v759
    %783 = vmatprep.subr.mxu0 0.0
    %784 = vmatpush1.msra.mxu0 %v760
    %785 = vmatprep.subr.mxu0 0.0
    %786 = vmatpush1.msra.mxu0 %v761
    %787 = vmatprep.subr.mxu0 0.0
    %788 = vmatpush1.msra.mxu0 %v762
    %789 = vmatprep.subr.mxu0 0.0
    %790 = vmatpush1.msra.mxu0 0.0
    %791 = vmatprep.subr.mxu0 0.0
    %792 = vmatpush1.msra.mxu0 0.0
    %793 = vmatprep.subr.mxu0 0.0
    %794 = vmatpush1.msra.mxu0 0.0
    %795 = vmatprep.subr.mxu0 0.0
    %796 = vmatpush1.msra.mxu0 0.0
    %797 = vmatprep.subr.mxu0 0.0
    %798 = vmatpush1.msra.mxu0 0.0
    %799 = vmatprep.subr.mxu0 0.0
    %800 = vmatpush1.msra.mxu0 0.0
    %801 = vmatprep.subr.mxu0 0.0
    %802 = vmatpush1.msra.mxu0 0.0
    %803 = vmatprep.subr.mxu0 0.0
    %804 = vmatpush1.msra.mxu0 0.0
    %805 = vmatprep.subr.mxu0 0.0
    %806 = vmatpush1.msra.mxu0 0.0
    %807 = vmatprep.subr.mxu0 0.0
    %808 = vmatpush1.msra.mxu0 0.0
    %809 = vmatprep.subr.mxu0 0.0
    %810 = vmatpush1.msra.mxu0 0.0
    %811 = vmatprep.subr.mxu0 0.0
    %812 = vmatpush1.msra.mxu0 0.0
    %813 = vmatprep.subr.mxu0 0.0
    %814 = vmatpush1.msra.mxu0 0.0
    %815 = vmatprep.subr.mxu0 0.0
    %816 = vmatpush1.msra.mxu0 0.0
    %817 = vmatprep.subr.mxu0 0.0
    %818 = vmatpush1.msra.mxu0 0.0
    %819 = vmatprep.subr.mxu0 0.0
    %820 = vmatpush1.msra.mxu0 0.0
    %821 = vmatprep.subr.mxu0 0.0
    %822 = vmatpush1.msra.mxu0 0.0
    %823 = vmatprep.subr.mxu0 0.0
    %824 = vmatpush1.msra.mxu0 0.0
    %825 = vmatprep.subr.mxu0 0.0
    %826 = vmatpush1.msra.mxu0 0.0
    %827 = vmatprep.subr.mxu0 0.0
    %828 = vmatpush1.msra.mxu0 0.0
    %829 = vmatprep.subr.mxu0 0.0
    %830 = vmatpush1.msra.mxu0 0.0
    %831 = vmatprep.subr.mxu0 0.0
    %832 = vmatpush1.msra.mxu0 0.0
    %833 = vmatprep.subr.mxu0 0.0
    %834 = vmatpush1.msra.mxu0 0.0
    %835 = vmatprep.subr.mxu0 0.0
    %836 = vmatpush1.msra.mxu0 0.0
    %837 = vmatprep.mubr.f32.mxu0 0.0
    %838 = vmatmul.mubr.f32.gmra.mrb[0].mxu0 %v771
    %v839 = vpop.f32.mrb[0].mxu0
    %v840 = vadd.f32 %v768, %v839
    %v841 = vpop.f32.mrb[0].mxu0
    %842 = vdwg.mxu0
    %843 = vst [vmem:[#allocation2] sm:$0x3] %v840
    // Predicated region
    $region38: #{tpu_custom_call.1} parent=1 // pred_check
      _
    $region39: #{tpu_custom_call.1} parent=1 // pred_check_branch
      %845 = sbr.rel (0) target = $region41
    $region40: #{tpu_custom_call.1} parent=1 // pred_region
      %s847 = ssub.s32 32, 32
      %848 = vsyncadd [#allocation3], %s847
      %s850 = sshll.u32 [#allocation2], 4
      %s851 = int_to_ptr.vmem [resolvable:$true] %s850
      %853 = dma.vmem_to_hbm [thread:$0]  %s851, 32, %s9, [#allocation3]
    $region41: #{tpu_custom_call.1} parent=1 // pred_fallthru
      _
    // Predicated region
    $region42: #{tpu_custom_call.1} parent=1 // pred_check
      _
    $region43: #{tpu_custom_call.1} parent=1 // pred_check_branch
      %855 = sbr.rel (0) target = $region45
    $region44: #{tpu_custom_call.1} parent=1 // pred_region
      %856 = dma.done [#allocation3], 32
    $region45: #{tpu_custom_call.1} parent=1 // pred_fallthru
      _
    %857 = vsyncpa [#allocation3], 1

</llo_original>
